<compile_context>
chip_gen: v7x
topology: tpu7x:2x2x1
jax: 0.10.0
libtpu: 0.0.40
codegen_flags: <defaults>
</compile_context>

<pallas_src>
import jax
import jax.numpy as jnp
from jax.experimental import pallas as pl
from jax.experimental.pallas import tpu as pltpu


_TARGET_TILE_BYTES = 2 << 20   # ~2 MiB per x/out tile (safe on all of v5e/v6e/v7x)
_MAX_LANE_TILE = 2048          # max columns per tile; multiple of 128


def _sublane_multiple(dtype) -> int:
    """Row-tile granularity: sub-32-bit dtypes pack along sublanes."""
    itemsize = jnp.dtype(dtype).itemsize
    return {4: 8, 2: 16, 1: 32}.get(itemsize, 8)


def _pos_enc_kernel(x_ref, pos_ref, o_ref):
    # Add in f32 (matches PyTorch promotion when pos is f32 and x is lower
    # precision), cast once to the output dtype.  pos_ref is (1, ft) and
    # broadcasts over the sublane (row) axis.
    x = x_ref[...].astype(jnp.float32)
    p = pos_ref[...].astype(jnp.float32)
    o_ref[...] = (x + p).astype(o_ref.dtype)


def positional_encoding(x: jax.Array, pos_emb: jax.Array, *, donate_x: bool = False) -> jax.Array:
    """out = x + pos_emb  (pos_emb broadcast over the batch axis).

    x:       (B, L, D)
    pos_emb: (1, L, D)   (any float dtype; added in f32, result cast to x.dtype)
    returns: (B, L, D), dtype of x
    """
    B, L, D = x.shape
    assert pos_emb.shape == (1, L, D), pos_emb.shape

    F = L * D
    itemsize = jnp.dtype(x.dtype).itemsize
    sub = _sublane_multiple(x.dtype)

    # Lane-dense 2-D views: (B, L*D) and (1, L*D).  No dtype cast here.
    x2 = x.reshape(B, F)
    p2 = pos_emb.reshape(1, F)

    # Column tile: full F if it fits (legal for any F), else a fixed 128-multiple;
    # pl.cdiv + masked edge block handles ragged F — no full-extent fallback.
    ft = F if F <= _MAX_LANE_TILE else _MAX_LANE_TILE

    # Row tile: sized so one tile is ~_TARGET_TILE_BYTES, rounded down to the
    # dtype-aware sublane multiple; full B if B already fits (legal for any B).
    row_bytes = ft * itemsize
    bt_target = max(sub, (_TARGET_TILE_BYTES // row_bytes) // sub * sub)
    bt = B if B <= bt_target else bt_target

    # Columns OUTER, rows INNER: pos' block index (0, j) is constant across the
    # inner (row) loop, so the pipeline skips re-fetching pos_emb between steps.
    grid = (pl.cdiv(F, ft), pl.cdiv(B, bt))

    out2 = pl.pallas_call(
        _pos_enc_kernel,
        out_shape=jax.ShapeDtypeStruct((B, F), x.dtype),
        grid=grid,
        in_specs=[
            pl.BlockSpec((bt, ft), lambda j, i: (i, j)),   # x tile
            pl.BlockSpec((1, ft), lambda j, i: (0, j)),    # pos tile (row-broadcast, stays resident along inner axis)
        ],
        out_specs=pl.BlockSpec((bt, ft), lambda j, i: (i, j)),
        compiler_params=pltpu.CompilerParams(
            dimension_semantics=("parallel", "parallel"),
        ),
        input_output_aliases=({0: 0} if donate_x else {}),
    )(x2, p2)

    return out2.reshape(B, L, D)


if __name__ == "__main__":
    # Module config consistent with the forward: embed_dim=32, maxlen=8
    batch, maxlen, embed_dim = 2, 8, 32

    key = jax.random.PRNGKey(0)
    kx, kp = jax.random.split(key)

    # Matches nn.Parameter(torch.randn(1, maxlen, embed_dim)) shape-wise.
    pos_emb = jax.random.normal(kp, (1, maxlen, embed_dim), dtype=jnp.float32)
    x = jax.random.normal(kx, (batch, maxlen, embed_dim), dtype=jnp.float32)

    out = positional_encoding(x, pos_emb)
    jax.block_until_ready(out)

    # Correctness check against plain-JAX reference (broadcasted add).
    ref = x + pos_emb
    assert out.shape == (batch, maxlen, embed_dim)
    assert jnp.allclose(out, ref, atol=1e-6, rtol=1e-6), "mismatch vs plain-JAX reference"

    # Mixed-precision path: bf16 activations + f32 positional table (add in f32,
    # round once to bf16 — matches PyTorch-style promotion then cast).
    x_bf16 = x.astype(jnp.bfloat16)
    out_bf16 = positional_encoding(x_bf16, pos_emb)
    jax.block_until_ready(out_bf16)
    ref_bf16 = (x_bf16.astype(jnp.float32) + pos_emb).astype(jnp.bfloat16)
    assert out_bf16.dtype == jnp.bfloat16
    assert jnp.allclose(out_bf16.astype(jnp.float32), ref_bf16.astype(jnp.float32),
                        atol=1e-6, rtol=1e-6), "mismatch in bf16 path"

    print("KERNEL_OK")
</pallas_src>

<mosaic_0001>
module attributes {stable_mosaic.version = 11 : i64} {
  func.func @_pos_enc_kernel(%arg0: i32, %arg1: i32, %arg2: memref<2x256xf32, #tpu.memory_space<vmem>>, %arg3: memref<1x256xf32, #tpu.memory_space<vmem>>, %arg4: memref<2x256xf32, #tpu.memory_space<vmem>>) attributes {dimension_semantics = [#tpu.dimension_semantics<parallel>, #tpu.dimension_semantics<parallel>], iteration_bounds = array<i64: 1, 1>, scalar_prefetch = 0 : i64, scratch_operands = 0 : i64, tpu.core_type = #tpu.core_type<tc>, window_params = [{transform_indices = @transform_0, window_bounds = array<i64: 2, 256>}, {transform_indices = @transform_1, window_bounds = array<i64: 1, 256>}, {transform_indices = @transform_2, window_bounds = array<i64: 2, 256>}]} {
    %c0 = arith.constant 0 : index
    %c0_0 = arith.constant 0 : index
    %0 = vector.load %arg2[%c0, %c0_0] : memref<2x256xf32, #tpu.memory_space<vmem>>, vector<2x256xf32>
    %c0_1 = arith.constant 0 : index
    %c0_2 = arith.constant 0 : index
    %1 = vector.load %arg3[%c0_1, %c0_2] : memref<1x256xf32, #tpu.memory_space<vmem>>, vector<1x256xf32>
    %2 = vector.broadcast %1 : vector<1x256xf32> to vector<2x256xf32>
    %3 = arith.addf %0, %2 : vector<2x256xf32>
    %c0_3 = arith.constant 0 : index
    %c0_4 = arith.constant 0 : index
    %4 = vector.load %arg4[%c0_3, %c0_4] : memref<2x256xf32, #tpu.memory_space<vmem>>, vector<2x256xf32>
    tpu.vector_store %arg4[%c0_3, %c0_4], %3 {strides = array<i32>} : memref<2x256xf32, #tpu.memory_space<vmem>>, vector<2x256xf32>,
    return
  }
  func.func @transform_0(%arg0: i32, %arg1: i32) -> (i32, i32) {
    %c0_i32 = arith.constant 0 : i32
    return %arg1, %arg0 : i32, i32
  }
  func.func @transform_1(%arg0: i32, %arg1: i32) -> (i32, i32) {
    %c0_i32 = arith.constant 0 : i32
    %c0_i32_0 = arith.constant 0 : i32
    return %c0_i32, %arg0 : i32, i32
  }
  func.func @transform_2(%arg0: i32, %arg1: i32) -> (i32, i32) {
    %c0_i32 = arith.constant 0 : i32
    return %arg1, %arg0 : i32, i32
  }
}

</mosaic_0001>

<llo_original>
// kernel: tpu_custom_call.1
$region0: #{tpu_custom_call.1}
  #allocation0 [shape = 'u32[]', space=smem, size = 0x4, offset = 0x4, fixed_abs, tag = 'smem constant byte address 0x4 - core index']
  #allocation1 [shape = 'u32[144,128]{1,0:T(1,128)}', space=vmem, size = 0x12000, scoped, tag = 'internal scratch']
  %s0 = inlined_call_operand.hbm [shape: f32[2,256], index: 0, kind: input, shape index: {}]
  %s1 = inlined_call_operand.vmem [shape: f32[1,256], index: 1, kind: input, shape index: {}]
  %s2 = inlined_call_operand.hbm [shape: f32[2,256], index: 2, kind: output, shape index: {}]
  %s3 = sld [smem:[#allocation0]]
  $region22: #{tpu_custom_call.1} parent=0
    _
  %s5 = ssub.s32 1, %s3
  %s6 = scalar_select 0, %s5, %s3
  $region1: #{tpu_custom_call.1} parent=0
    #allocation2 [shape = 'u8[2048]{0}', space=vmem, size = 0x800, scoped, tag = 'input window, operand 0, single buffered']
    #allocation3 [shape = 's32[1]{0}', space=sflag, size = 0x4, scoped, tag = 'scoped memory for tpu_custom_call.1']
    #allocation4 [shape = 's32[1]{0}', space=sflag, size = 0x4, scoped, tag = 'scoped memory for tpu_custom_call.1']
    #allocation5 [shape = 'u8[2048]{0}', space=vmem, size = 0x800, scoped, tag = 'output window, operand 0, single buffered']
    %7 = vsyncpa [#allocation3], 0
    %8 = vsyncpa [#allocation4], 0
    // Predicated region
    $region2: #{tpu_custom_call.1} parent=1 // pred_check
      _
    $region3: #{tpu_custom_call.1} parent=1 // pred_check_branch
      %10 = sbr.rel (0) target = $region5
    $region4: #{tpu_custom_call.1} parent=1 // pred_region
      %s12 = ssub.s32 64, 64
      %13 = vsyncadd [#allocation3], %s12
      %s15 = sshll.u32 [#allocation2], 4
      %s16 = int_to_ptr.vmem [resolvable:$true] %s15
      %18 = dma.hbm_to_vmem [thread:$0]  %s0, 64, %s16, [#allocation3]
    $region5: #{tpu_custom_call.1} parent=1 // pred_fallthru
      _
    // Predicated region
    $region6: #{tpu_custom_call.1} parent=1 // pred_check
      _
    $region7: #{tpu_custom_call.1} parent=1 // pred_check_branch
      %20 = sbr.rel (0) target = $region9
    $region8: #{tpu_custom_call.1} parent=1 // pred_region
      _
    $region9: #{tpu_custom_call.1} parent=1 // pred_fallthru
      _
    // Predicated region
    $region10: #{tpu_custom_call.1} parent=1 // pred_check
      _
    $region11: #{tpu_custom_call.1} parent=1 // pred_check_branch
      %22 = sbr.rel (0) target = $region13
    $region12: #{tpu_custom_call.1} parent=1 // pred_region
      %23 = dma.done [#allocation3], 64
    $region13: #{tpu_custom_call.1} parent=1 // pred_fallthru
      _
    %v24 = vld [vmem:[#allocation2] sm:$0xf]
    %v25 = vld [vmem:[%s1] sm:$0x3]
    %v27 = vlaneseq
    %v28 = vshrl.u32 %v27, 7
    %v29 = vsub.s32 0, %v28
    %v30 = vrot.slane %v25, %v29
    %v31 = vlaneseq
    %v32 = vshrl.u32 %v31, 7
    %v33 = vsub.s32 1, %v32
    %v34 = vrot.slane %v25, %v33
    %v35 = vcombine.low %v30, %v34
    %v37 = vunpack.c.l.s4 1983009808
    %v38 = vunpack.c.0.s8 %v37
    %v39 = vlaneseq
    %v40 = vshrl.u32 %v39, 7
    %v41 = vsub.s32 %v38, %v40
    %v42 = vrot.slane %v35, %v41
    %v44 = vadd.f32 %v24, %v42
    %45 = vst [vmem:[#allocation5] sm:$0xf] %v44
    // Predicated region
    $region14: #{tpu_custom_call.1} parent=1 // pred_check
      _
    $region15: #{tpu_custom_call.1} parent=1 // pred_check_branch
      %47 = sbr.rel (0) target = $region17
    $region16: #{tpu_custom_call.1} parent=1 // pred_region
      %s49 = ssub.s32 64, 64
      %50 = vsyncadd [#allocation4], %s49
      %s52 = sshll.u32 [#allocation5], 4
      %s53 = int_to_ptr.vmem [resolvable:$true] %s52
      %55 = dma.vmem_to_hbm [thread:$0]  %s53, 64, %s2, [#allocation4]
    $region17: #{tpu_custom_call.1} parent=1 // pred_fallthru
      _
    // Predicated region
    $region18: #{tpu_custom_call.1} parent=1 // pred_check
      _
    $region19: #{tpu_custom_call.1} parent=1 // pred_check_branch
      %57 = sbr.rel (0) target = $region21
    $region20: #{tpu_custom_call.1} parent=1 // pred_region
      %58 = dma.done [#allocation4], 64
    $region21: #{tpu_custom_call.1} parent=1 // pred_fallthru
      _
    %59 = vsyncpa [#allocation3], 1
    %60 = vsyncpa [#allocation4], 1

</llo_original>
